<compile_context>
chip_gen: v7x
topology: tpu7x:2x2x1
jax: 0.10.0
libtpu: 0.0.40
codegen_flags: <defaults>
</compile_context>

<pallas_src>
import functools

import numpy as np
import jax
import jax.numpy as jnp
from jax.experimental import pallas as pl
from jax.experimental.pallas import tpu as pltpu


# ----------------------------------------------------------------------------
# Fused Pallas kernel: Chebyshev recursion + linear, one batch element per step
# ----------------------------------------------------------------------------

def _chebconv_fused_kernel(x_ref, lt_ref, w_ref, o_ref, *, K):
    """One batch element per grid step.

    x_ref : (1, Fin, V)    f32   input signal (rows=features, lanes=vertices)
    lt_ref: (V, V)         bf16  rescaled-Laplacian TRANSPOSE (resident)
    w_ref : (K, Fout, Fin) bf16  repacked linear weight       (resident)
    o_ref : (1, Fout, V)   f32   output slab (lane-dense in V)
    """
    lt = lt_ref[...]                                        # (V, V) bf16

    # T0 = X0 ; accumulate W_0 @ T0
    t_prev = x_ref[0].astype(jnp.float32)                   # (Fin, V) f32 carry
    acc = jnp.dot(w_ref[0], t_prev.astype(jnp.bfloat16),
                  preferred_element_type=jnp.float32)       # (Fout, V) f32

    if K > 1:
        # T1 = Lr @ T0   (done as T0 @ Lr^T in the vertex-minor layout)
        t_curr = jnp.dot(t_prev.astype(jnp.bfloat16), lt,
                         preferred_element_type=jnp.float32)
        acc = acc + jnp.dot(w_ref[1], t_curr.astype(jnp.bfloat16),
                            preferred_element_type=jnp.float32)
        for k in range(2, K):
            # Tk = 2 Lr T_{k-1} - T_{k-2}
            t_next = 2.0 * jnp.dot(t_curr.astype(jnp.bfloat16), lt,
                                   preferred_element_type=jnp.float32) - t_prev
            acc = acc + jnp.dot(w_ref[k], t_next.astype(jnp.bfloat16),
                                preferred_element_type=jnp.float32)
            t_prev, t_curr = t_curr, t_next

    o_ref[0] = acc


# ----------------------------------------------------------------------------
# One-time host-side preprocessing (per graph / per layer, NOT per forward)
# ----------------------------------------------------------------------------

def precompute_chebconv(L, lmax, weight, Fin, K):
    """L: (V,V) dense Laplacian, lmax: largest eigenvalue of L (precomputed),
    weight: (Fout, K*Fin) nn.Linear weight, columns flattened as (Fin, K).
    Returns (Lr^T as bf16, weight repacked to (K, Fout, Fin) bf16)."""
    V = L.shape[0]
    Lr = L / (lmax * 2.0) - jnp.eye(V, dtype=L.dtype)     # module's rescale
    lrt = Lr.T.astype(jnp.bfloat16)                        # (V, V)
    Fout = weight.shape[0]
    w_packed = jnp.transpose(weight.reshape(Fout, Fin, K), (2, 0, 1))
    return lrt, w_packed.astype(jnp.bfloat16)              # (K, Fout, Fin)


# ----------------------------------------------------------------------------
# Forward wrapper
# ----------------------------------------------------------------------------

@jax.jit
def chebconv_forward(x, lrt, w_packed):
    """x: (B, Fin, V) f32, lrt: (V, V) bf16, w_packed: (K, Fout, Fin) bf16."""
    B, Fin, V = x.shape
    K, Fout, _ = w_packed.shape

    # VMEM budget: resident Lr^T + W (bf16), double-buffered x/out blocks,
    # f32 recursion carries + accumulator, with headroom.
    resident = 2 * (V * V * 2 + K * Fout * Fin * 2)
    per_step = 2 * (Fin * V * 4 + Fout * V * 4)
    working = 6 * Fin * V * 4 + 2 * Fout * V * 4 + V * V * 2
    vmem_bytes = int(min(64 * 2**20,
                         max(4 * 2**20, 2 * (resident + per_step + working))))

    return pl.pallas_call(
        functools.partial(_chebconv_fused_kernel, K=K),
        out_shape=jax.ShapeDtypeStruct((B, Fout, V), jnp.float32),
        grid=(B,),
        in_specs=[
            pl.BlockSpec((1, Fin, V), lambda b: (b, 0, 0)),       # per-batch slab
            pl.BlockSpec((V, V), lambda b: (0, 0)),               # Lr^T resident
            pl.BlockSpec((K, Fout, Fin), lambda b: (0, 0, 0)),    # W resident
        ],
        out_specs=pl.BlockSpec((1, Fout, V), lambda b: (b, 0, 0)),
        compiler_params=pltpu.CompilerParams(
            dimension_semantics=("parallel",),
            vmem_limit_bytes=vmem_bytes,
        ),
    )(x, lrt, w_packed)


# ----------------------------------------------------------------------------
# Reference: mirrors the PyTorch module math (torch layout path), applying the
# same bf16 operand quantization the kernel applies (f32 carries/accumulation)
# ----------------------------------------------------------------------------

def _q_bf16(a):
    return np.asarray(jnp.asarray(a).astype(jnp.bfloat16).astype(jnp.float32))


def chebconv_reference(x, Lr_q, W_q, K):
    x = np.asarray(x, np.float32)
    Lr = np.asarray(Lr_q, np.float32)
    W = np.asarray(W_q, np.float32)
    B, Fin, V = x.shape
    xt = np.transpose(x, (0, 2, 1))                        # (B, V, Fin)
    x0 = np.transpose(xt, (1, 2, 0)).reshape(V, Fin * B)   # (V, Fin*B)
    t_prev = x0
    ts = [_q_bf16(t_prev)]
    if K > 1:
        t_curr = Lr @ ts[0]
        ts.append(_q_bf16(t_curr))
        for _ in range(2, K):
            t_next = 2.0 * (Lr @ ts[-1]) - t_prev
            ts.append(_q_bf16(t_next))
            t_prev, t_curr = t_curr, t_next
    xs = np.stack(ts, 0).reshape(K, V, Fin, B)
    xs = np.transpose(xs, (3, 1, 2, 0)).reshape(B * V, Fin * K)
    y = (xs @ W.T).reshape(B, V, -1)
    return np.transpose(y, (0, 2, 1))                      # (B, Fout, V)


# ----------------------------------------------------------------------------
# Main
# ----------------------------------------------------------------------------

if __name__ == "__main__":
    B, Fin, V, Fout, K = 2, 4, 16, 8, 4

    key = jax.random.PRNGKey(0)
    kx, kw = jax.random.split(key)

    # Input signal on the graph: (B, Fin, V)
    x = jax.random.normal(kx, (B, Fin, V), dtype=jnp.float32)

    # Synthetic ring-graph Laplacian L = D - A (symmetric PSD), dense.
    # TODO(synk): the module uses a scipy.sparse L + torch.sparse.mm; no clean
    # Pallas sparse-matmul equivalent here, so L is densified.
    A = np.zeros((V, V), dtype=np.float32)
    for i in range(V):
        A[i, (i + 1) % V] = 1.0
        A[(i + 1) % V, i] = 1.0
    L_np = np.diag(A.sum(1)).astype(np.float32) - A
    L = jnp.asarray(L_np)

    # nn.Linear(K*Fin, Fout, bias=False) weight, uniform(-scale, scale)
    scale = float(np.sqrt(2.0 / (Fin + Fout)))
    weight = jax.random.uniform(kw, (Fout, K * Fin), dtype=jnp.float32,
                                minval=-scale, maxval=scale)
    # TODO(synk): bias=True branch omitted (module default is bias=False).

    # One-time per-graph spectral bound (out of the per-forward path).
    lmax = float(np.linalg.eigvalsh(L_np.astype(np.float64))[-1])

    lrt_bf16, w_packed_bf16 = precompute_chebconv(L, lmax, weight, Fin, K)

    y = chebconv_forward(x, lrt_bf16, w_packed_bf16)
    y = jax.block_until_ready(y)

    # Reference uses the same bf16-quantized Lr / W values reconstructed in the
    # ORIGINAL torch layout, so it cross-checks the repacking + kernel layout.
    Lr_q = np.asarray(lrt_bf16.astype(jnp.float32).T)
    W_q = np.asarray(jnp.transpose(w_packed_bf16.astype(jnp.float32),
                                   (1, 2, 0)).reshape(Fout, Fin * K))
    y_ref = chebconv_reference(np.asarray(x), Lr_q, W_q, K)

    assert y.shape == (B, Fout, V), y.shape
    np.testing.assert_allclose(np.asarray(y), y_ref, rtol=2e-3, atol=2e-3)

    print("KERNEL_OK")
</pallas_src>

<mosaic_0001>
module attributes {stable_mosaic.version = 11 : i64} {
  func.func @_chebconv_fused_kernel(%arg0: i32, %arg1: memref<1x4x16xf32, #tpu.memory_space<vmem>>, %arg2: memref<16x16xbf16, #tpu.memory_space<vmem>>, %arg3: memref<4x8x4xbf16, #tpu.memory_space<vmem>>, %arg4: memref<1x8x16xf32, #tpu.memory_space<vmem>>) attributes {dimension_semantics = [#tpu.dimension_semantics<parallel>], iteration_bounds = array<i64: 2>, scalar_prefetch = 0 : i64, scratch_operands = 0 : i64, tpu.core_type = #tpu.core_type<tc>, window_params = [{transform_indices = @transform_0, window_bounds = array<i64: 1, 4, 16>}, {pipeline_mode = #tpu.pipeline_mode<synchronous>, transform_indices = @transform_1, window_bounds = array<i64: 16, 16>}, {pipeline_mode = #tpu.pipeline_mode<synchronous>, transform_indices = @transform_2, window_bounds = array<i64: 4, 8, 4>}, {transform_indices = @transform_3, window_bounds = array<i64: 1, 8, 16>}]} {
    %c0 = arith.constant 0 : index
    %c0_0 = arith.constant 0 : index
    %0 = vector.load %arg2[%c0, %c0_0] : memref<16x16xbf16, #tpu.memory_space<vmem>>, vector<16x16xbf16>
    %c0_1 = arith.constant 0 : index
    %c0_2 = arith.constant 0 : index
    %c0_3 = arith.constant 0 : index
    %1 = vector.load %arg1[%c0_1, %c0_2, %c0_3] : memref<1x4x16xf32, #tpu.memory_space<vmem>>, vector<1x4x16xf32>
    %2 = vector.shape_cast %1 : vector<1x4x16xf32> to vector<4x16xf32>
    %c0_4 = arith.constant 0 : index
    %c0_5 = arith.constant 0 : index
    %c0_6 = arith.constant 0 : index
    %3 = vector.load %arg3[%c0_4, %c0_5, %c0_6] : memref<4x8x4xbf16, #tpu.memory_space<vmem>>, vector<1x8x4xbf16>
    %4 = vector.shape_cast %3 : vector<1x8x4xbf16> to vector<8x4xbf16>
    %5 = arith.truncf %2 : vector<4x16xf32> to vector<4x16xbf16>
    %cst = arith.constant dense<0.000000e+00> : vector<8x16xf32>
    %6 = tpu.matmul %4, %5, %cst {dimension_numbers = #tpu.dot_dimension_numbers<[1], [0], [0], [1], [0, 0, 1, 1], [], []>} : vector<8x4xbf16>, vector<4x16xbf16>, vector<8x16xf32> -> vector<8x16xf32>
    %7 = arith.truncf %2 : vector<4x16xf32> to vector<4x16xbf16>
    %cst_7 = arith.constant dense<0.000000e+00> : vector<4x16xf32>
    %8 = tpu.matmul %7, %0, %cst_7 {dimension_numbers = #tpu.dot_dimension_numbers<[1], [0], [0], [1], [0, 0, 1, 1], [], []>} : vector<4x16xbf16>, vector<16x16xbf16>, vector<4x16xf32> -> vector<4x16xf32>
    %c1 = arith.constant 1 : index
    %c0_8 = arith.constant 0 : index
    %c0_9 = arith.constant 0 : index
    %9 = vector.load %arg3[%c1, %c0_8, %c0_9] : memref<4x8x4xbf16, #tpu.memory_space<vmem>>, vector<1x8x4xbf16>
    %10 = vector.shape_cast %9 : vector<1x8x4xbf16> to vector<8x4xbf16>
    %11 = arith.truncf %8 : vector<4x16xf32> to vector<4x16xbf16>
    %cst_10 = arith.constant dense<0.000000e+00> : vector<8x16xf32>
    %12 = tpu.matmul %10, %11, %cst_10 {dimension_numbers = #tpu.dot_dimension_numbers<[1], [0], [0], [1], [0, 0, 1, 1], [], []>} : vector<8x4xbf16>, vector<4x16xbf16>, vector<8x16xf32> -> vector<8x16xf32>
    %13 = arith.addf %6, %12 : vector<8x16xf32>
    %14 = arith.truncf %8 : vector<4x16xf32> to vector<4x16xbf16>
    %cst_11 = arith.constant dense<0.000000e+00> : vector<4x16xf32>
    %15 = tpu.matmul %14, %0, %cst_11 {dimension_numbers = #tpu.dot_dimension_numbers<[1], [0], [0], [1], [0, 0, 1, 1], [], []>} : vector<4x16xbf16>, vector<16x16xbf16>, vector<4x16xf32> -> vector<4x16xf32>
    %cst_12 = arith.constant 2.000000e+00 : f32
    %16 = vector.broadcast %cst_12 : f32 to vector<4x16xf32>
    %17 = arith.mulf %16, %15 : vector<4x16xf32>
    %18 = arith.subf %17, %2 : vector<4x16xf32>
    %c2 = arith.constant 2 : index
    %c0_13 = arith.constant 0 : index
    %c0_14 = arith.constant 0 : index
    %19 = vector.load %arg3[%c2, %c0_13, %c0_14] : memref<4x8x4xbf16, #tpu.memory_space<vmem>>, vector<1x8x4xbf16>
    %20 = vector.shape_cast %19 : vector<1x8x4xbf16> to vector<8x4xbf16>
    %21 = arith.truncf %18 : vector<4x16xf32> to vector<4x16xbf16>
    %cst_15 = arith.constant dense<0.000000e+00> : vector<8x16xf32>
    %22 = tpu.matmul %20, %21, %cst_15 {dimension_numbers = #tpu.dot_dimension_numbers<[1], [0], [0], [1], [0, 0, 1, 1], [], []>} : vector<8x4xbf16>, vector<4x16xbf16>, vector<8x16xf32> -> vector<8x16xf32>
    %23 = arith.addf %13, %22 : vector<8x16xf32>
    %24 = arith.truncf %18 : vector<4x16xf32> to vector<4x16xbf16>
    %cst_16 = arith.constant dense<0.000000e+00> : vector<4x16xf32>
    %25 = tpu.matmul %24, %0, %cst_16 {dimension_numbers = #tpu.dot_dimension_numbers<[1], [0], [0], [1], [0, 0, 1, 1], [], []>} : vector<4x16xbf16>, vector<16x16xbf16>, vector<4x16xf32> -> vector<4x16xf32>
    %cst_17 = arith.constant 2.000000e+00 : f32
    %26 = vector.broadcast %cst_17 : f32 to vector<4x16xf32>
    %27 = arith.mulf %26, %25 : vector<4x16xf32>
    %28 = arith.subf %27, %8 : vector<4x16xf32>
    %c3 = arith.constant 3 : index
    %c0_18 = arith.constant 0 : index
    %c0_19 = arith.constant 0 : index
    %29 = vector.load %arg3[%c3, %c0_18, %c0_19] : memref<4x8x4xbf16, #tpu.memory_space<vmem>>, vector<1x8x4xbf16>
    %30 = vector.shape_cast %29 : vector<1x8x4xbf16> to vector<8x4xbf16>
    %31 = arith.truncf %28 : vector<4x16xf32> to vector<4x16xbf16>
    %cst_20 = arith.constant dense<0.000000e+00> : vector<8x16xf32>
    %32 = tpu.matmul %30, %31, %cst_20 {dimension_numbers = #tpu.dot_dimension_numbers<[1], [0], [0], [1], [0, 0, 1, 1], [], []>} : vector<8x4xbf16>, vector<4x16xbf16>, vector<8x16xf32> -> vector<8x16xf32>
    %33 = arith.addf %23, %32 : vector<8x16xf32>
    %c0_21 = arith.constant 0 : index
    %c0_22 = arith.constant 0 : index
    %c0_23 = arith.constant 0 : index
    %34 = vector.load %arg4[%c0_21, %c0_22, %c0_23] : memref<1x8x16xf32, #tpu.memory_space<vmem>>, vector<1x8x16xf32>
    %35 = vector.shape_cast %34 : vector<1x8x16xf32> to vector<8x16xf32>
    %36 = vector.shape_cast %33 : vector<8x16xf32> to vector<1x8x16xf32>
    tpu.vector_store %arg4[%c0_21, %c0_22, %c0_23], %36 {strides = array<i32>} : memref<1x8x16xf32, #tpu.memory_space<vmem>>, vector<1x8x16xf32>,
    return
  }
  func.func @transform_0(%arg0: i32) -> (i32, i32, i32) {
    %c0_i32 = arith.constant 0 : i32
    %c0_i32_0 = arith.constant 0 : i32
    %c0_i32_1 = arith.constant 0 : i32
    return %arg0, %c0_i32, %c0_i32_0 : i32, i32, i32
  }
  func.func @transform_1(%arg0: i32) -> (i32, i32) {
    %c0_i32 = arith.constant 0 : i32
    %c0_i32_0 = arith.constant 0 : i32
    %c0_i32_1 = arith.constant 0 : i32
    return %c0_i32, %c0_i32_0 : i32, i32
  }
  func.func @transform_2(%arg0: i32) -> (i32, i32, i32) {
    %c0_i32 = arith.constant 0 : i32
    %c0_i32_0 = arith.constant 0 : i32
    %c0_i32_1 = arith.constant 0 : i32
    %c0_i32_2 = arith.constant 0 : i32
    return %c0_i32, %c0_i32_0, %c0_i32_1 : i32, i32, i32
  }
  func.func @transform_3(%arg0: i32) -> (i32, i32, i32) {
    %c0_i32 = arith.constant 0 : i32
    %c0_i32_0 = arith.constant 0 : i32
    %c0_i32_1 = arith.constant 0 : i32
    return %arg0, %c0_i32, %c0_i32_0 : i32, i32, i32
  }
}

</mosaic_0001>

<llo_original>
// kernel: chebconv_forward.1
$region0: #{chebconv_forward.1}
  #allocation0 [shape = 'u32[]', space=smem, size = 0x4, offset = 0x4, fixed_abs, tag = 'smem constant byte address 0x4 - core index']
  #allocation1 [shape = 'u32[144,128]{1,0:T(1,128)}', space=vmem, size = 0x12000, scoped, tag = 'internal scratch']
  %s0 = inlined_call_operand.vmem [shape: f32[2,4,16], index: 0, kind: input, shape index: {}]
  %s1 = inlined_call_operand.vmem [shape: bf16[16,16], index: 1, kind: input, shape index: {}]
  %s2 = inlined_call_operand.vmem [shape: bf16[4,8,4], index: 2, kind: input, shape index: {}]
  %s3 = inlined_call_operand.hbm [shape: f32[2,8,16], index: 3, kind: output, shape index: {}]
  %s4 = sld [smem:[#allocation0]]
  $region45: #{chebconv_forward.1} parent=0
    _
  %s6 = ssub.s32 1, %s4
  %s7 = scalar_select 0, %s6, %s4
  $region1: #{chebconv_forward.1} parent=0
    #allocation2 [shape = 'u8[8192]{0}', space=vmem, size = 0x2000, scoped, tag = 'output window, operand 0']
    #allocation3 [shape = 's32[2]{0}', space=sflag, size = 0x8, scoped, tag = 'scoped memory for chebconv_forward.1']
    %8 = vsyncpa [#allocation3], 0
    %s9 = scalar_lea.sflag [#allocation3], 1
    %10 = vsyncpa %s9, 0
    loop: start=0, step=1, limit=4
    $region2: #{chebconv_forward.1} parent=1 // loop_pre_header
      _
    $region3: #{chebconv_forward.1} parent=1 // loop_header
      %s12 = sphi 0, %s16
      %p13 = scmp.ge.s32.totalorder %s12, 4
      %s22 = sphi 0, %s24
      %s25 = sphi 0, %s22
      %s26 = sphi 0, %s25
      %s42 = sphi 0, %s26
      %s46 = sphi 0, %s46
      %s48 = sphi 0, %s46
      %s49 = sphi 0, %s48
      %s63 = sphi 0, %s49
      %s67 = sphi 0, %s67
      %s69 = sphi 0, %s67
      %s70 = sphi 0, %s69
      %s84 = sphi 0, %s70
      %s90 = sphi 0, %s92
      %s93 = sphi 0, %s90
      %s94 = sphi 0, %s93
      %s110 = sphi 0, %s94
    $region4: #{chebconv_forward.1} parent=1 // loop_header_branch
      %15 = sbr.rel (%p13) target = $region8
    $region5: #{chebconv_forward.1} parent=1 // loop_body
      %s17 = ssub.s32 %s12, 1
      %s18 = ssub.s32 %s12, 2
      %s19 = sadd.s32 %s12, 1
      %s20 = ssub.s32 %s12, %s19
      %p21 = scmp.eq.s32.totalorder %s20, 0
      %s23 = sadd.s32 %s22, 1
      %s24 = scalar_select %p21, %s22, %s23
      %p27 = pneg %p21
      %p28 = scmp.eq.s32.totalorder %s12, 1
      %p29 = por %p27, %p28
      %p30 = scmp.ne.s32.totalorder %s22, %s25
      %p31 = scmp.eq.s32.totalorder %s12, 0
      %p32 = por %p30, %p31
      %p33 = scmp.ne.s32.totalorder %s22, %s25
      %p34 = scmp.eq.s32.totalorder %s17, 1
      %p35 = por %p33, %p34
      %p36 = scmp.ne.s32.totalorder %s25, %s26
      %p37 = scmp.eq.s32.totalorder %s17, 0
      %p38 = por %p36, %p37
      %p39 = scmp.ne.s32.totalorder %s25, %s26
      %p40 = scmp.eq.s32.totalorder %s18, 1
      %p41 = por %p39, %p40
      %p43 = scmp.ne.s32.totalorder %s26, %s42
      %p44 = scmp.eq.s32.totalorder %s18, 0
      %p45 = por %p43, %p44
      %s47 = sadd.s32 %s46, 1
      %p50 = scmp.eq.s32.totalorder %s12, 1
      %p51 = scmp.ne.s32.totalorder %s46, %s48
      %p52 = scmp.eq.s32.totalorder %s12, 0
      %p53 = por %p51, %p52
      %p54 = scmp.ne.s32.totalorder %s46, %s48
      %p55 = scmp.eq.s32.totalorder %s17, 1
      %p56 = por %p54, %p55
      %p57 = scmp.ne.s32.totalorder %s48, %s49
      %p58 = scmp.eq.s32.totalorder %s17, 0
      %p59 = por %p57, %p58
      %p60 = scmp.ne.s32.totalorder %s48, %s49
      %p61 = scmp.eq.s32.totalorder %s18, 1
      %p62 = por %p60, %p61
      %p64 = scmp.ne.s32.totalorder %s49, %s63
      %p65 = scmp.eq.s32.totalorder %s18, 0
      %p66 = por %p64, %p65
      %s68 = sadd.s32 %s67, 1
      %p71 = scmp.eq.s32.totalorder %s12, 1
      %p72 = scmp.ne.s32.totalorder %s67, %s69
      %p73 = scmp.eq.s32.totalorder %s12, 0
      %p74 = por %p72, %p73
      %p75 = scmp.ne.s32.totalorder %s67, %s69
      %p76 = scmp.eq.s32.totalorder %s17, 1
      %p77 = por %p75, %p76
      %p78 = scmp.ne.s32.totalorder %s69, %s70
      %p79 = scmp.eq.s32.totalorder %s17, 0
      %p80 = por %p78, %p79
      %p81 = scmp.ne.s32.totalorder %s69, %s70
      %p82 = scmp.eq.s32.totalorder %s18, 1
      %p83 = por %p81, %p82
      %p85 = scmp.ne.s32.totalorder %s70, %s84
      %p86 = scmp.eq.s32.totalorder %s18, 0
      %p87 = por %p85, %p86
      %s88 = ssub.s32 %s12, %s19
      %p89 = scmp.eq.s32.totalorder %s88, 0
      %s91 = sadd.s32 %s90, 1
      %s92 = scalar_select %p89, %s90, %s91
      %p95 = pneg %p89
      %p96 = scmp.eq.s32.totalorder %s12, 1
      %p97 = por %p95, %p96
      %p98 = scmp.ne.s32.totalorder %s90, %s93
      %p99 = scmp.eq.s32.totalorder %s12, 0
      %p100 = por %p98, %p99
      %p101 = scmp.ne.s32.totalorder %s90, %s93
      %p102 = scmp.eq.s32.totalorder %s17, 1
      %p103 = por %p101, %p102
      %p104 = scmp.ne.s32.totalorder %s93, %s94
      %p105 = scmp.eq.s32.totalorder %s17, 0
      %p106 = por %p104, %p105
      %p107 = scmp.ne.s32.totalorder %s93, %s94
      %p108 = scmp.eq.s32.totalorder %s18, 1
      %p109 = por %p107, %p108
      %p111 = scmp.ne.s32.totalorder %s94, %s110
      %p112 = scmp.eq.s32.totalorder %s18, 0
      %p113 = por %p111, %p112
      %p114 = scmp.le.s32.totalorder 1, %s12
      %p115 = scmp.lt.s32.totalorder %s12, 3
      %p116 = pnand %p114, %p115
      %p117 = pneg %p116
      // Predicated region
      $region9: #{chebconv_forward.1} parent=5 // pred_check
        _
      $region10: #{chebconv_forward.1} parent=5 // pred_check_branch
        %119 = sbr.rel (%p116) target = $region12
      $region11: #{chebconv_forward.1} parent=5 // pred_region
        %s120 = ssub.s32 %s12, 1
        // Predicated region
        $region13: #{chebconv_forward.1} parent=11 // pred_check
          %p121 = pneg %p59
        $region14: #{chebconv_forward.1} parent=11 // pred_check_branch
          %123 = sbr.rel (%p121) target = $region16
        $region15: #{chebconv_forward.1} parent=11 // pred_region
          _
        $region16: #{chebconv_forward.1} parent=11 // pred_fallthru
          _
        // Predicated region
        $region17: #{chebconv_forward.1} parent=11 // pred_check
          %p124 = pneg %p80
        $region18: #{chebconv_forward.1} parent=11 // pred_check_branch
          %126 = sbr.rel (%p124) target = $region20
        $region19: #{chebconv_forward.1} parent=11 // pred_region
          _
        $region20: #{chebconv_forward.1} parent=11 // pred_fallthru
          _
      $region12: #{chebconv_forward.1} parent=5 // pred_fallthru
        _
      %p127 = scmp.lt.s32.totalorder %s12, 2
      // Predicated region
      $region21: #{chebconv_forward.1} parent=5 // pred_check
        %p128 = pneg %p127
      $region22: #{chebconv_forward.1} parent=5 // pred_check_branch
        %130 = sbr.rel (%p128) target = $region24
      $region23: #{chebconv_forward.1} parent=5 // pred_region
        // Predicated region
        $region25: #{chebconv_forward.1} parent=23 // pred_check
          %p131 = pneg %p32
        $region26: #{chebconv_forward.1} parent=23 // pred_check_branch
          %133 = sbr.rel (%p131) target = $region28
        $region27: #{chebconv_forward.1} parent=23 // pred_region
          %p134 = scmp.lt.s32.totalorder %s12, 1
          %s135 = scalar_select %p134, %s12, 1
          %s136 = smul.addr %s135, 4
          %s137 = scalar_lea.vmem %s0, %s136
        $region28: #{chebconv_forward.1} parent=23 // pred_fallthru
          _
      $region24: #{chebconv_forward.1} parent=5 // pred_fallthru
        _
      %p138 = scmp.le.s32.totalorder 1, %s12
      %p139 = scmp.lt.s32.totalorder %s12, 3
      %p140 = pnand %p138, %p139
      %p141 = pneg %p140
      // Predicated region
      $region29: #{chebconv_forward.1} parent=5 // pred_check
        _
      $region30: #{chebconv_forward.1} parent=5 // pred_check_branch
        %143 = sbr.rel (%p140) target = $region32
      $region31: #{chebconv_forward.1} parent=5 // pred_region
        %s144 = ssub.s32 %s12, 1
        %p145 = scmp.lt.s32.totalorder %s17, 1
        %s146 = scalar_select %p145, %s17, 1
        %s147 = smul.addr %s146, 4
        %s148 = scalar_lea.vmem %s0, %s147
        %p149 = pneg %p38
        %p150 = pneg %p35
        %p151 = pneg %p59
        %p152 = pneg %p56
        %p153 = pneg %p80
        %p154 = pneg %p77
        %p155 = pneg %p106
        %p156 = pneg %p103
        %s157 = sand.u32 %s93, 1
        %s158 = scalar_lea.sflag [#allocation3], %s157
        %s159 = sand.u32 %s93, 1
        %s160 = smul.addr %s159, 8
        %s161 = scalar_lea.vmem [#allocation2], %s160
        %p162 = scmp.lt.s32.totalorder %s17, 1
        %s163 = scalar_select %p162, %s17, 1
        %s164 = smul.addr %s163, 4
        %s165 = scalar_lea.vmem %s0, %s164
        %v167 = vld [vmem:[%s1] sm:$0xf]
        %v168 = vld [vmem:[%s1 + $0x4] sm:$0xf]
        %v169 = vld [vmem:[%s165] sm:$0xf]
        %v170 = vld [vmem:[%s2] sm:$0xf]
        %v171 = vpack.c.bf16 %v169, %v169
        %v174 = vunpack.c.l.b16 %v167
        %v175 = vunpack.c.l.b16 %v168
        %v176 = vpack.c.b16 %v175, %v174
        %vm178 = vcmask 130048
        %v180 = vsel %vm178, %v171, 0
        %182 = vmatprep.subr.bf16.mxu0 0
        %183 = vmatpush1.bf16.msra.mxu0 %v176
        %184 = vmatprep.subr.bf16.mxu0 0
        %185 = vmatpush1.bf16.msra.mxu0 0
        %186 = vmatprep.subr.bf16.mxu0 0
        %187 = vmatpush1.bf16.msra.mxu0 0
        %188 = vmatprep.subr.bf16.mxu0 0
        %189 = vmatpush1.bf16.msra.mxu0 0
        %190 = vmatprep.subr.bf16.mxu0 0
        %191 = vmatpush1.bf16.msra.mxu0 0
        %192 = vmatprep.subr.bf16.mxu0 0
        %193 = vmatpush1.bf16.msra.mxu0 0
        %194 = vmatprep.subr.bf16.mxu0 0
        %195 = vmatpush1.bf16.msra.mxu0 0
        %196 = vmatprep.subr.bf16.mxu0 0
        %197 = vmatpush1.bf16.msra.mxu0 0
        %198 = vmatprep.subr.bf16.mxu0 0
        %199 = vmatpush1.bf16.msra.mxu0 0
        %200 = vmatprep.subr.bf16.mxu0 0
        %201 = vmatpush1.bf16.msra.mxu0 0
        %202 = vmatprep.subr.bf16.mxu0 0
        %203 = vmatpush1.bf16.msra.mxu0 0
        %204 = vmatprep.subr.bf16.mxu0 0
        %205 = vmatpush1.bf16.msra.mxu0 0
        %206 = vmatprep.subr.bf16.mxu0 0
        %207 = vmatpush1.bf16.msra.mxu0 0
        %208 = vmatprep.subr.bf16.mxu0 0
        %209 = vmatpush1.bf16.msra.mxu0 0
        %210 = vmatprep.subr.bf16.mxu0 0
        %211 = vmatpush1.bf16.msra.mxu0 0
        %212 = vmatprep.subr.bf16.mxu0 0
        %213 = vmatpush1.bf16.msra.mxu0 0
        %214 = vmatprep.mubr.bf16.mxu0 0
        %215 = vmatmul.mubr.bf16.gmra.mrb[0].mxu0 %v180
        %v216 = vpop.f32.mrb[0].mxu0
        %v217 = vadd.f32 0.0, %v216
        %v218 = vpop.f32.mrb[0].mxu0
        %v219 = vpop.f32.mrb[0].mxu0
        %v220 = vpop.f32.mrb[0].mxu0
        %221 = vdwg.mxu0
        %s222 = scalar_lea.vmem %s2, 4
        %v223 = vld [vmem:[%s222] sm:$0xf]
        %v224 = vpack.c.bf16 %v217, %v217
        %vm225 = vcmask 31744
        %v227 = vsel %vm225, %v223, 0
        %vm229 = vcmask 1041408
        %v231 = vsel %vm229, %v224, 0
        %233 = vmatprep.subr.bf16.mxu0 0
        %234 = vmatpush1.bf16.msra.mxu0 %v231
        %235 = vmatprep.subr.bf16.mxu0 0
        %236 = vmatpush1.bf16.msra.mxu0 0
        %237 = vmatprep.subr.bf16.mxu0 0
        %238 = vmatpush1.bf16.msra.mxu0 0
        %239 = vmatprep.subr.bf16.mxu0 0
        %240 = vmatpush1.bf16.msra.mxu0 0
        %241 = vmatprep.subr.bf16.mxu0 0
        %242 = vmatpush1.bf16.msra.mxu0 0
        %243 = vmatprep.subr.bf16.mxu0 0
        %244 = vmatpush1.bf16.msra.mxu0 0
        %245 = vmatprep.subr.bf16.mxu0 0
        %246 = vmatpush1.bf16.msra.mxu0 0
        %247 = vmatprep.subr.bf16.mxu0 0
        %248 = vmatpush1.bf16.msra.mxu0 0
        %249 = vmatprep.subr.bf16.mxu0 0
        %250 = vmatpush1.bf16.msra.mxu0 0
        %251 = vmatprep.subr.bf16.mxu0 0
        %252 = vmatpush1.bf16.msra.mxu0 0
        %253 = vmatprep.subr.bf16.mxu0 0
        %254 = vmatpush1.bf16.msra.mxu0 0
        %255 = vmatprep.subr.bf16.mxu0 0
        %256 = vmatpush1.bf16.msra.mxu0 0
        %257 = vmatprep.subr.bf16.mxu0 0
        %258 = vmatpush1.bf16.msra.mxu0 0
        %259 = vmatprep.subr.bf16.mxu0 0
        %260 = vmatpush1.bf16.msra.mxu0 0
        %261 = vmatprep.subr.bf16.mxu0 0
        %262 = vmatpush1.bf16.msra.mxu0 0
        %263 = vmatprep.subr.bf16.mxu0 0
        %264 = vmatpush1.bf16.msra.mxu0 0
        %265 = vmatprep.mubr.bf16.mxu0 0
        %266 = vmatmul.mubr.bf16.gmra.mrb[0].mxu0 %v227
        %v267 = vpop.f32.mrb[0].mxu0
        %v268 = vadd.f32 0.0, %v267
        %v269 = vpop.f32.mrb[0].mxu0
        %v270 = vpop.f32.mrb[0].mxu0
        %v271 = vpop.f32.mrb[0].mxu0
        %272 = vdwg.mxu0
        %v274 = vsel %vm225, %v170, 0
        %v276 = vsel %vm229, %v171, 0
        %278 = vmatprep.subr.bf16.mxu0 0
        %279 = vmatpush1.bf16.msra.mxu0 %v276
        %280 = vmatprep.subr.bf16.mxu0 0
        %281 = vmatpush1.bf16.msra.mxu0 0
        %282 = vmatprep.subr.bf16.mxu0 0
        %283 = vmatpush1.bf16.msra.mxu0 0
        %284 = vmatprep.subr.bf16.mxu0 0
        %285 = vmatpush1.bf16.msra.mxu0 0
        %286 = vmatprep.subr.bf16.mxu0 0
        %287 = vmatpush1.bf16.msra.mxu0 0
        %288 = vmatprep.subr.bf16.mxu0 0
        %289 = vmatpush1.bf16.msra.mxu0 0
        %290 = vmatprep.subr.bf16.mxu0 0
        %291 = vmatpush1.bf16.msra.mxu0 0
        %292 = vmatprep.subr.bf16.mxu0 0
        %293 = vmatpush1.bf16.msra.mxu0 0
        %294 = vmatprep.subr.bf16.mxu0 0
        %295 = vmatpush1.bf16.msra.mxu0 0
        %296 = vmatprep.subr.bf16.mxu0 0
        %297 = vmatpush1.bf16.msra.mxu0 0
        %298 = vmatprep.subr.bf16.mxu0 0
        %299 = vmatpush1.bf16.msra.mxu0 0
        %300 = vmatprep.subr.bf16.mxu0 0
        %301 = vmatpush1.bf16.msra.mxu0 0
        %302 = vmatprep.subr.bf16.mxu0 0
        %303 = vmatpush1.bf16.msra.mxu0 0
        %304 = vmatprep.subr.bf16.mxu0 0
        %305 = vmatpush1.bf16.msra.mxu0 0
        %306 = vmatprep.subr.bf16.mxu0 0
        %307 = vmatpush1.bf16.msra.mxu0 0
        %308 = vmatprep.subr.bf16.mxu0 0
        %309 = vmatpush1.bf16.msra.mxu0 0
        %310 = vmatprep.mubr.bf16.mxu0 0
        %311 = vmatmul.mubr.bf16.gmra.mrb[0].mxu0 %v274
        %v312 = vpop.f32.mrb[0].mxu0
        %v313 = vadd.f32 %v268, %v312
        %v314 = vpop.f32.mrb[0].mxu0
        %v315 = vpop.f32.mrb[0].mxu0
        %v316 = vpop.f32.mrb[0].mxu0
        %317 = vdwg.mxu0
        %v318 = vsel %vm178, %v224, 0
        %320 = vmatprep.subr.bf16.mxu0 0
        %321 = vmatpush1.bf16.msra.mxu0 %v176
        %322 = vmatprep.subr.bf16.mxu0 0
        %323 = vmatpush1.bf16.msra.mxu0 0
        %324 = vmatprep.subr.bf16.mxu0 0
        %325 = vmatpush1.bf16.msra.mxu0 0
        %326 = vmatprep.subr.bf16.mxu0 0
        %327 = vmatpush1.bf16.msra.mxu0 0
        %328 = vmatprep.subr.bf16.mxu0 0
        %329 = vmatpush1.bf16.msra.mxu0 0
        %330 = vmatprep.subr.bf16.mxu0 0
        %331 = vmatpush1.bf16.msra.mxu0 0
        %332 = vmatprep.subr.bf16.mxu0 0
        %333 = vmatpush1.bf16.msra.mxu0 0
        %334 = vmatprep.subr.bf16.mxu0 0
        %335 = vmatpush1.bf16.msra.mxu0 0
        %336 = vmatprep.subr.bf16.mxu0 0
        %337 = vmatpush1.bf16.msra.mxu0 0
        %338 = vmatprep.subr.bf16.mxu0 0
        %339 = vmatpush1.bf16.msra.mxu0 0
        %340 = vmatprep.subr.bf16.mxu0 0
        %341 = vmatpush1.bf16.msra.mxu0 0
        %342 = vmatprep.subr.bf16.mxu0 0
        %343 = vmatpush1.bf16.msra.mxu0 0
        %344 = vmatprep.subr.bf16.mxu0 0
        %345 = vmatpush1.bf16.msra.mxu0 0
        %346 = vmatprep.subr.bf16.mxu0 0
        %347 = vmatpush1.bf16.msra.mxu0 0
        %348 = vmatprep.subr.bf16.mxu0 0
        %349 = vmatpush1.bf16.msra.mxu0 0
        %350 = vmatprep.subr.bf16.mxu0 0
        %351 = vmatpush1.bf16.msra.mxu0 0
        %352 = vmatprep.mubr.bf16.mxu0 0
        %353 = vmatmul.mubr.bf16.gmra.mrb[0].mxu0 %v318
        %v354 = vpop.f32.mrb[0].mxu0
        %v355 = vadd.f32 0.0, %v354
        %v356 = vpop.f32.mrb[0].mxu0
        %v357 = vpop.f32.mrb[0].mxu0
        %v358 = vpop.f32.mrb[0].mxu0
        %359 = vdwg.mxu0
        %v360 = vmul.f32 %v355, 2.0
        %v361 = vsub.f32 %v360, %v169
        %s362 = scalar_lea.vmem %s2, 8
        %v363 = vld [vmem:[%s362] sm:$0xf]
        %v364 = vpack.c.bf16 %v361, %v361
        %v366 = vsel %vm225, %v363, 0
        %v369 = vsel %vm229, %v364, 0
        %371 = vmatprep.subr.bf16.mxu0 0
        %372 = vmatpush1.bf16.msra.mxu0 %v369
        %373 = vmatprep.subr.bf16.mxu0 0
        %374 = vmatpush1.bf16.msra.mxu0 0
        %375 = vmatprep.subr.bf16.mxu0 0
        %376 = vmatpush1.bf16.msra.mxu0 0
        %377 = vmatprep.subr.bf16.mxu0 0
        %378 = vmatpush1.bf16.msra.mxu0 0
        %379 = vmatprep.subr.bf16.mxu0 0
        %380 = vmatpush1.bf16.msra.mxu0 0
        %381 = vmatprep.subr.bf16.mxu0 0
        %382 = vmatpush1.bf16.msra.mxu0 0
        %383 = vmatprep.subr.bf16.mxu0 0
        %384 = vmatpush1.bf16.msra.mxu0 0
        %385 = vmatprep.subr.bf16.mxu0 0
        %386 = vmatpush1.bf16.msra.mxu0 0
        %387 = vmatprep.subr.bf16.mxu0 0
        %388 = vmatpush1.bf16.msra.mxu0 0
        %389 = vmatprep.subr.bf16.mxu0 0
        %390 = vmatpush1.bf16.msra.mxu0 0
        %391 = vmatprep.subr.bf16.mxu0 0
        %392 = vmatpush1.bf16.msra.mxu0 0
        %393 = vmatprep.subr.bf16.mxu0 0
        %394 = vmatpush1.bf16.msra.mxu0 0
        %395 = vmatprep.subr.bf16.mxu0 0
        %396 = vmatpush1.bf16.msra.mxu0 0
        %397 = vmatprep.subr.bf16.mxu0 0
        %398 = vmatpush1.bf16.msra.mxu0 0
        %399 = vmatprep.subr.bf16.mxu0 0
        %400 = vmatpush1.bf16.msra.mxu0 0
        %401 = vmatprep.subr.bf16.mxu0 0
        %402 = vmatpush1.bf16.msra.mxu0 0
        %403 = vmatprep.mubr.bf16.mxu0 0
        %404 = vmatmul.mubr.bf16.gmra.mrb[0].mxu0 %v366
        %v405 = vpop.f32.mrb[0].mxu0
        %v406 = vadd.f32 0.0, %v405
        %v407 = vpop.f32.mrb[0].mxu0
        %v408 = vpop.f32.mrb[0].mxu0
        %v409 = vpop.f32.mrb[0].mxu0
        %410 = vdwg.mxu0
        %v411 = vadd.f32 %v313, %v406
        %v412 = vsel %vm178, %v364, 0
        %414 = vmatprep.subr.bf16.mxu0 0
        %415 = vmatpush1.bf16.msra.mxu0 %v176
        %416 = vmatprep.subr.bf16.mxu0 0
        %417 = vmatpush1.bf16.msra.mxu0 0
        %418 = vmatprep.subr.bf16.mxu0 0
        %419 = vmatpush1.bf16.msra.mxu0 0
        %420 = vmatprep.subr.bf16.mxu0 0
        %421 = vmatpush1.bf16.msra.mxu0 0
        %422 = vmatprep.subr.bf16.mxu0 0
        %423 = vmatpush1.bf16.msra.mxu0 0
        %424 = vmatprep.subr.bf16.mxu0 0
        %425 = vmatpush1.bf16.msra.mxu0 0
        %426 = vmatprep.subr.bf16.mxu0 0
        %427 = vmatpush1.bf16.msra.mxu0 0
        %428 = vmatprep.subr.bf16.mxu0 0
        %429 = vmatpush1.bf16.msra.mxu0 0
        %430 = vmatprep.subr.bf16.mxu0 0
        %431 = vmatpush1.bf16.msra.mxu0 0
        %432 = vmatprep.subr.bf16.mxu0 0
        %433 = vmatpush1.bf16.msra.mxu0 0
        %434 = vmatprep.subr.bf16.mxu0 0
        %435 = vmatpush1.bf16.msra.mxu0 0
        %436 = vmatprep.subr.bf16.mxu0 0
        %437 = vmatpush1.bf16.msra.mxu0 0
        %438 = vmatprep.subr.bf16.mxu0 0
        %439 = vmatpush1.bf16.msra.mxu0 0
        %440 = vmatprep.subr.bf16.mxu0 0
        %441 = vmatpush1.bf16.msra.mxu0 0
        %442 = vmatprep.subr.bf16.mxu0 0
        %443 = vmatpush1.bf16.msra.mxu0 0
        %444 = vmatprep.subr.bf16.mxu0 0
        %445 = vmatpush1.bf16.msra.mxu0 0
        %446 = vmatprep.mubr.bf16.mxu0 0
        %447 = vmatmul.mubr.bf16.gmra.mrb[0].mxu0 %v412
        %v448 = vpop.f32.mrb[0].mxu0
        %v449 = vadd.f32 0.0, %v448
        %v450 = vpop.f32.mrb[0].mxu0
        %v451 = vpop.f32.mrb[0].mxu0
        %v452 = vpop.f32.mrb[0].mxu0
        %453 = vdwg.mxu0
        %v454 = vmul.f32 %v449, 2.0
        %v455 = vsub.f32 %v454, %v217
        %s456 = scalar_lea.vmem %s2, 12
        %v457 = vld [vmem:[%s456] sm:$0xf]
        %v458 = vpack.c.bf16 %v455, %v455
        %v460 = vsel %vm225, %v457, 0
        %v463 = vsel %vm229, %v458, 0
        %465 = vmatprep.subr.bf16.mxu0 0
        %466 = vmatpush1.bf16.msra.mxu0 %v463
        %467 = vmatprep.subr.bf16.mxu0 0
        %468 = vmatpush1.bf16.msra.mxu0 0
        %469 = vmatprep.subr.bf16.mxu0 0
        %470 = vmatpush1.bf16.msra.mxu0 0
        %471 = vmatprep.subr.bf16.mxu0 0
        %472 = vmatpush1.bf16.msra.mxu0 0
        %473 = vmatprep.subr.bf16.mxu0 0
        %474 = vmatpush1.bf16.msra.mxu0 0
        %475 = vmatprep.subr.bf16.mxu0 0
        %476 = vmatpush1.bf16.msra.mxu0 0
        %477 = vmatprep.subr.bf16.mxu0 0
        %478 = vmatpush1.bf16.msra.mxu0 0
        %479 = vmatprep.subr.bf16.mxu0 0
        %480 = vmatpush1.bf16.msra.mxu0 0
        %481 = vmatprep.subr.bf16.mxu0 0
        %482 = vmatpush1.bf16.msra.mxu0 0
        %483 = vmatprep.subr.bf16.mxu0 0
        %484 = vmatpush1.bf16.msra.mxu0 0
        %485 = vmatprep.subr.bf16.mxu0 0
        %486 = vmatpush1.bf16.msra.mxu0 0
        %487 = vmatprep.subr.bf16.mxu0 0
        %488 = vmatpush1.bf16.msra.mxu0 0
        %489 = vmatprep.subr.bf16.mxu0 0
        %490 = vmatpush1.bf16.msra.mxu0 0
        %491 = vmatprep.subr.bf16.mxu0 0
        %492 = vmatpush1.bf16.msra.mxu0 0
        %493 = vmatprep.subr.bf16.mxu0 0
        %494 = vmatpush1.bf16.msra.mxu0 0
        %495 = vmatprep.subr.bf16.mxu0 0
        %496 = vmatpush1.bf16.msra.mxu0 0
        %497 = vmatprep.mubr.bf16.mxu0 0
        %498 = vmatmul.mubr.bf16.gmra.mrb[0].mxu0 %v460
        %v499 = vpop.f32.mrb[0].mxu0
        %v500 = vadd.f32 0.0, %v499
        %v501 = vpop.f32.mrb[0].mxu0
        %v502 = vpop.f32.mrb[0].mxu0
        %v503 = vpop.f32.mrb[0].mxu0
        %504 = vdwg.mxu0
        %v505 = vadd.f32 %v411, %v500
        %506 = vst.msk [vmem:[%s161] sm:$0xff] %vm178, %v505
        %s507 = sand.u32 %s93, 1
        %s508 = scalar_lea.sflag [#allocation3], %s507
        %s509 = sand.u32 %s93, 1
        %s510 = smul.addr %s509, 8
        %s511 = scalar_lea.vmem [#allocation2], %s510
        // Predicated region
        $region33: #{chebconv_forward.1} parent=31 // pred_check
          %p512 = pneg %p103
        $region34: #{chebconv_forward.1} parent=31 // pred_check_branch
          %514 = sbr.rel (%p512) target = $region36
        $region35: #{chebconv_forward.1} parent=31 // pred_region
          %s516 = ssub.s32 128, 128
          %517 = vsyncadd %s508, %s516
          %s518 = smul.addr %s17, 128
          %s519 = scalar_lea.hbm %s3, %s518
          %s521 = sshll.u32 %s511, 4
          %s522 = int_to_ptr.vmem [resolvable:$true] %s521
          %524 = dma.vmem_to_hbm [thread:$0]  %s522, 128, %s519, %s508
        $region36: #{chebconv_forward.1} parent=31 // pred_fallthru
          _
      $region32: #{chebconv_forward.1} parent=5 // pred_fallthru
        _
      %p525 = scmp.le.s32.totalorder 2, %s12
      // Predicated region
      $region37: #{chebconv_forward.1} parent=5 // pred_check
        %p526 = pneg %p525
      $region38: #{chebconv_forward.1} parent=5 // pred_check_branch
        %528 = sbr.rel (%p526) target = $region40
      $region39: #{chebconv_forward.1} parent=5 // pred_region
        %s529 = ssub.s32 %s12, 2
        // Predicated region
        $region41: #{chebconv_forward.1} parent=39 // pred_check
          %p530 = pneg %p109
        $region42: #{chebconv_forward.1} parent=39 // pred_check_branch
          %532 = sbr.rel (%p530) target = $region44
        $region43: #{chebconv_forward.1} parent=39 // pred_region
          %s533 = sand.u32 %s94, 1
          %s534 = scalar_lea.sflag [#allocation3], %s533
          %s535 = sand.u32 %s94, 1
          %s536 = smul.addr %s535, 8
          %s537 = scalar_lea.vmem [#allocation2], %s536
          %538 = dma.done %s534, 128
        $region44: #{chebconv_forward.1} parent=39 // pred_fallthru
          _
      $region40: #{chebconv_forward.1} parent=5 // pred_fallthru
        _
    $region6: #{chebconv_forward.1} parent=1 // loop_footer
      %s16 = sadd.s32 1, %s12
    $region7: #{chebconv_forward.1} parent=1 // loop_footer_branch
      %11 = sbr.rel target = $region3
    $region8: #{chebconv_forward.1} parent=1 // loop_exit
      _
    %539 = vsyncpa [#allocation3], 1
    %s540 = scalar_lea.sflag [#allocation3], 1
    %541 = vsyncpa %s540, 1

</llo_original>
